<compile_context>
chip_gen: v5e
topology: v5e:2x2
jax: 0.10.0
libtpu: 0.0.40
codegen_flags: <defaults>
</compile_context>

<pallas_src>
import functools

import numpy as np
import jax
import jax.numpy as jnp
from jax.experimental import pallas as pl
from jax.experimental.pallas import tpu as pltpu


# ----------------------------------------------------------------------------
# Mask construction (identical logic to MaskedConv2d.build_mask, plain numpy).
# ----------------------------------------------------------------------------
def build_mask(in_features, out_features, size_kernel=(3, 3), diagonal_zeros=False):
    n_in, n_out = in_features, out_features
    assert n_out % n_in == 0 or n_in % n_out == 0, "%d - %d" % (n_in, n_out)
    l = (size_kernel[0] - 1) // 2
    m = (size_kernel[1] - 1) // 2
    mask = np.ones((n_out, n_in, size_kernel[0], size_kernel[1]), dtype=np.float32)
    mask[:, :, :l, :] = 0
    mask[:, :, l, :m] = 0
    if n_out >= n_in:
        k = n_out // n_in
        for i in range(n_in):
            mask[i * k:(i + 1) * k, i + 1:, l, m] = 0
            if diagonal_zeros:
                mask[i * k:(i + 1) * k, i:i + 1, l, m] = 0
    else:
        k = n_in // n_out
        for i in range(n_out):
            mask[i:i + 1, (i + 1) * k:, l, m] = 0
            if diagonal_zeros:
                mask[i:i + 1, i * k:(i + 1) * k, l, m] = 0
    return mask


# ----------------------------------------------------------------------------
# Pallas kernel: 3x3 "same" masked conv, whole batch in one grid step.
#   x_ref     : (N, Cin, H*W)        lane-dense flattened input (NCHW-major)
#   w_ref     : (Cout, T*Cpad)       masked weights, live-tap-major, ch-padded
#   b_ref     : (Cout, 1)            bias
#   o_ref     : (N, Cout, H*W)       lane-dense output
#   patch_ref : (T*Cpad, N*H*W)      im2col scratch (VMEM), live taps only
# ----------------------------------------------------------------------------
def masked_conv2d_kernel(x_ref, w_ref, b_ref, o_ref, patch_ref,
                         *, H, W, live_taps, Cpad):
    N, Cin, HW = x_ref.shape

    # ---- Hoisted per-image coordinates & elementary boundary masks (VPU). ----
    # (Valid only for |dy|,|dx| <= 1, i.e. a 3x3 kernel - asserted in wrapper.)
    dys = [dy for dy, _ in live_taps]
    dxs = [dx for _, dx in live_taps]
    p = jax.lax.broadcasted_iota(jnp.int32, (Cin, HW), 1)            # p = y*W + x
    col = p % W if (any(d != 0 for d in dxs)) else None              # x coord
    m_top   = (p >= W)           if any(d < 0 for d in dys) else None  # y-1 ok
    m_bot   = (p < (H - 1) * W)  if any(d > 0 for d in dys) else None  # y+1 ok
    m_left  = (col >= 1)         if any(d < 0 for d in dxs) else None  # x-1 ok
    m_right = (col <= W - 2)     if any(d > 0 for d in dxs) else None  # x+1 ok

    # Per-tap combined validity mask, shared by every image in the batch.
    tap_valid = []
    for dy, dx in live_taps:
        conds = []
        if dy < 0:
            conds.append(m_top)
        if dy > 0:
            conds.append(m_bot)
        if dx < 0:
            conds.append(m_left)
        if dx > 0:
            conds.append(m_right)
        v = None
        for c in conds:
            v = c if v is None else (v & c)
        tap_valid.append(v)

    npad = Cpad - Cin
    pad_block = jnp.zeros((npad, HW), jnp.float32) if npad else None  # hoisted

    # ---- Build the (K, N*HW) im2col scratch with full-tile stores only. ----
    for n in range(N):                        # static unroll over the batch
        x2 = x_ref[n].astype(jnp.float32)     # (Cin, HW) lane-dense
        for t, (dy, dx) in enumerate(live_taps):
            s = dy * W + dx                   # all live 3x3 taps have s >= 0
            shifted = pltpu.roll(x2, shift=(-s) % HW, axis=1) if s else x2
            if tap_valid[t] is not None:
                # Every roll-wrapped lane is also a masked lane -> exact halo.
                shifted = jnp.where(tap_valid[t], shifted, 0.0)
            blk = (jnp.concatenate([shifted, pad_block], axis=0)
                   if npad else shifted)      # (Cpad, HW), pad rows kept finite
            patch_ref[t * Cpad:(t + 1) * Cpad, n * HW:(n + 1) * HW] = blk

    # ---- Single lane-dense MXU contraction + bias. ----
    acc = jnp.dot(w_ref[...], patch_ref[...],
                  preferred_element_type=jnp.float32)      # (Cout, N*HW)
    acc = acc + b_ref[...]                                 # (Cout, 1) broadcast
    for n in range(N):                                     # lane-aligned slabs
        o_ref[n] = acc[:, n * HW:(n + 1) * HW].astype(o_ref.dtype)


# ----------------------------------------------------------------------------
# Wrapper: NCHW in, NCHW out (PyTorch convention). Only free reshapes on the
# activations; the (small) weight is restricted to the live taps and flattened.
# ----------------------------------------------------------------------------
def masked_conv2d(x_nchw, weight_oihw, bias, mask_oihw):
    N, Cin, H, W = x_nchw.shape
    Cout, _, KH, KW = weight_oihw.shape
    assert (KH, KW) == (3, 3), "module hardcodes padding=(1,1) for a 3x3 kernel"
    HW = H * W
    cy, cx = (KH - 1) // 2, (KW - 1) // 2

    # Structurally-zero taps of build_mask(): all kh < cy, and (kh=cy, kw < cx).
    live_khkw = [(kh, kw) for kh in range(KH) for kw in range(KW)
                 if not (kh < cy or (kh == cy and kw < cx))]
    live_taps = tuple((kh - cy, kw - cx) for kh, kw in live_khkw)

    Cpad = ((Cin + 7) // 8) * 8            # channel stride -> full sublane group
    K = len(live_taps) * Cpad              # 5 * 8 = 40 for this config

    # Masked weight restricted to the live taps, tap-major, channel-padded:
    #   w2[co, t*Cpad + ci] = (mask*weight)[co, ci, kh_t, kw_t]
    w_m = (mask_oihw * weight_oihw).astype(jnp.float32)    # (Cout, Cin, KH, KW)
    cols = []
    for kh, kw in live_khkw:
        wt = w_m[:, :, kh, kw]                             # (Cout, Cin)
        if Cpad > Cin:
            wt = jnp.pad(wt, ((0, 0), (0, Cpad - Cin)))
        cols.append(wt)
    w2 = jnp.concatenate(cols, axis=1)                     # (Cout, K) — one small DMA

    b2 = bias.reshape(Cout, 1).astype(jnp.float32)
    x_flat = x_nchw.reshape(N, Cin, HW)                    # free reshape (NCHW-major)

    kernel = functools.partial(masked_conv2d_kernel,
                               H=H, W=W, live_taps=live_taps, Cpad=Cpad)

    out_flat = pl.pallas_call(
        kernel,
        out_shape=jax.ShapeDtypeStruct((N, Cout, HW), x_nchw.dtype),
        grid_spec=pltpu.PrefetchScalarGridSpec(
            num_scalar_prefetch=0,
            grid=(1,),                     # whole batch fused into one step
            in_specs=[
                pl.BlockSpec((N, Cin, HW), lambda i: (0, 0, 0)),
                pl.BlockSpec((Cout, K), lambda i: (0, 0)),
                pl.BlockSpec((Cout, 1), lambda i: (0, 0)),
            ],
            out_specs=pl.BlockSpec((N, Cout, HW), lambda i: (0, 0, 0)),
            scratch_shapes=[pltpu.VMEM((K, N * HW), jnp.float32)],
        ),
        compiler_params=pltpu.CompilerParams(
            dimension_semantics=("arbitrary",)),
    )(x_flat, w2, b2)

    return out_flat.reshape(N, Cout, H, W)                 # free reshape → NCHW


# ----------------------------------------------------------------------------
# Reference (pure JAX) conv for correctness checking.
# ----------------------------------------------------------------------------
def masked_conv2d_ref(x_nchw, weight_oihw, bias, mask_oihw):
    w = mask_oihw * weight_oihw
    out = jax.lax.conv_general_dilated(
        x_nchw, w, window_strides=(1, 1), padding=((1, 1), (1, 1)),
        dimension_numbers=("NCHW", "OIHW", "NCHW"))
    return out + bias.reshape(1, -1, 1, 1)


if __name__ == "__main__":
    # Module config: MaskedConv2d(in_features=4, out_features=8, (3,3), bias=True)
    in_features, out_features = 4, 8
    size_kernel = (3, 3)
    diagonal_zeros = False
    N, H, W = 2, 16, 16

    key = jax.random.PRNGKey(0)
    kx, kw = jax.random.split(key)

    # Deterministic parameter init (kaiming-normal-like weight, zero bias,
    # matching reset_parameters()).
    fan_in = in_features * size_kernel[0] * size_kernel[1]
    std = float(np.sqrt(2.0 / fan_in))
    weight = jax.random.normal(
        kw, (out_features, in_features, *size_kernel), dtype=jnp.float32) * std
    bias = jnp.zeros((out_features,), dtype=jnp.float32)
    mask = jnp.asarray(build_mask(in_features, out_features, size_kernel,
                                  diagonal_zeros))

    x = jax.random.normal(kx, (N, in_features, H, W), dtype=jnp.float32)

    out = jax.block_until_ready(masked_conv2d(x, weight, bias, mask))
    ref = jax.block_until_ready(masked_conv2d_ref(x, weight, bias, mask))

    assert out.shape == (N, out_features, H, W)
    np.testing.assert_allclose(np.asarray(out), np.asarray(ref),
                               rtol=1e-4, atol=1e-4)

    print("KERNEL_OK")
</pallas_src>

<mosaic_0001>
module attributes {stable_mosaic.version = 11 : i64} {
  func.func @masked_conv2d_kernel(%arg0: i32, %arg1: memref<2x4x256xf32, #tpu.memory_space<vmem>>, %arg2: memref<8x40xf32, #tpu.memory_space<vmem>>, %arg3: memref<8x1xf32, #tpu.memory_space<vmem>>, %arg4: memref<2x8x256xf32, #tpu.memory_space<vmem>>, %arg5: memref<40x512xf32, #tpu.memory_space<vmem>>) attributes {dimension_semantics = [#tpu.dimension_semantics<arbitrary>], iteration_bounds = array<i64: 1>, scalar_prefetch = 0 : i64, scratch_operands = 1 : i64, tpu.core_type = #tpu.core_type<tc>, window_params = [{pipeline_mode = #tpu.pipeline_mode<synchronous>, transform_indices = @transform_0, window_bounds = array<i64: 2, 4, 256>}, {pipeline_mode = #tpu.pipeline_mode<synchronous>, transform_indices = @transform_1, window_bounds = array<i64: 8, 40>}, {pipeline_mode = #tpu.pipeline_mode<synchronous>, transform_indices = @transform_2, window_bounds = array<i64: 8, 1>}, {pipeline_mode = #tpu.pipeline_mode<synchronous>, transform_indices = @transform_3, window_bounds = array<i64: 2, 8, 256>}]} {
    %0 = tpu.iota {dimensions = array<i32: 1>} : vector<4x256xi32>
    %c16_i32 = arith.constant 16 : i32
    %c0_i32 = arith.constant 0 : i32
    %1 = arith.cmpi eq, %c16_i32, %c0_i32 : i32
    %c1_i32 = arith.constant 1 : i32
    %2 = arith.select %1, %c1_i32, %c16_i32 : i32
    %3 = vector.broadcast %2 : i32 to vector<4x256xi32>
    %4 = arith.remsi %0, %3 : vector<4x256xi32>
    %c0_i32_0 = arith.constant 0 : i32
    %5 = vector.broadcast %c0_i32_0 : i32 to vector<4x256xi32>
    %6 = arith.cmpi ne, %4, %5 : vector<4x256xi32>
    %c0_i32_1 = arith.constant 0 : i32
    %7 = vector.broadcast %c0_i32_1 : i32 to vector<4x256xi32>
    %8 = arith.cmpi slt, %4, %7 : vector<4x256xi32>
    %c0_i32_2 = arith.constant 0 : i32
    %9 = arith.cmpi slt, %2, %c0_i32_2 : i32
    %10 = vector.broadcast %9 : i1 to vector<4x256xi1>
    %11 = vector.broadcast %10 : vector<4x256xi1> to vector<4x256xi1>
    %12 = arith.xori %8, %11 : vector<4x256xi1>
    %13 = arith.andi %12, %6 : vector<4x256xi1>
    %14 = vector.broadcast %2 : i32 to vector<4x256xi32>
    %15 = arith.addi %4, %14 : vector<4x256xi32>
    %16 = arith.select %13, %15, %4 : vector<4x256xi1>, vector<4x256xi32>
    %c240_i32 = arith.constant 240 : i32
    %17 = vector.broadcast %c240_i32 : i32 to vector<4x256xi32>
    %18 = arith.cmpi slt, %0, %17 : vector<4x256xi32>
    %c1_i32_3 = arith.constant 1 : i32
    %19 = vector.broadcast %c1_i32_3 : i32 to vector<4x256xi32>
    %20 = arith.cmpi sge, %16, %19 : vector<4x256xi32>
    %c14_i32 = arith.constant 14 : i32
    %21 = vector.broadcast %c14_i32 : i32 to vector<4x256xi32>
    %22 = arith.cmpi sle, %16, %21 : vector<4x256xi32>
    %23 = arith.andi %18, %20 : vector<4x256xi1>
    %24 = arith.andi %18, %22 : vector<4x256xi1>
    %cst = arith.constant 0.000000e+00 : f32
    %25 = vector.broadcast %cst : f32 to vector<4x256xf32>
    %c0 = arith.constant 0 : index
    %c0_4 = arith.constant 0 : index
    %c0_5 = arith.constant 0 : index
    %26 = vector.load %arg1[%c0, %c0_4, %c0_5] : memref<2x4x256xf32, #tpu.memory_space<vmem>>, vector<1x4x256xf32>
    %27 = vector.shape_cast %26 : vector<1x4x256xf32> to vector<4x256xf32>
    %28 = tpu.concatenate %27, %25 in 0 : vector<4x256xf32>, vector<4x256xf32> -> vector<8x256xf32>
    %c0_6 = arith.constant 0 : index
    %c0_7 = arith.constant 0 : index
    %29 = vector.load %arg5[%c0_6, %c0_7] : memref<40x512xf32, #tpu.memory_space<vmem>>, vector<8x256xf32>
    tpu.vector_store %arg5[%c0_6, %c0_7], %28 {strides = array<i32>} : memref<40x512xf32, #tpu.memory_space<vmem>>, vector<8x256xf32>,
    %c255_i32 = arith.constant 255 : i32
    %30 = tpu.dynamic_rotate %27 by %c255_i32 dim 1 : vector<4x256xf32>, i32 -> vector<4x256xf32>
    %cst_8 = arith.constant 0.000000e+00 : f32
    %31 = vector.broadcast %cst_8 : f32 to vector<4x256xf32>
    %32 = arith.select %22, %30, %31 : vector<4x256xi1>, vector<4x256xf32>
    %33 = tpu.concatenate %32, %25 in 0 : vector<4x256xf32>, vector<4x256xf32> -> vector<8x256xf32>
    %c8 = arith.constant 8 : index
    %c0_9 = arith.constant 0 : index
    %34 = vector.load %arg5[%c8, %c0_9] : memref<40x512xf32, #tpu.memory_space<vmem>>, vector<8x256xf32>
    tpu.vector_store %arg5[%c8, %c0_9], %33 {strides = array<i32>} : memref<40x512xf32, #tpu.memory_space<vmem>>, vector<8x256xf32>,
    %c241_i32 = arith.constant 241 : i32
    %35 = tpu.dynamic_rotate %27 by %c241_i32 dim 1 : vector<4x256xf32>, i32 -> vector<4x256xf32>
    %cst_10 = arith.constant 0.000000e+00 : f32
    %36 = vector.broadcast %cst_10 : f32 to vector<4x256xf32>
    %37 = arith.select %23, %35, %36 : vector<4x256xi1>, vector<4x256xf32>
    %38 = tpu.concatenate %37, %25 in 0 : vector<4x256xf32>, vector<4x256xf32> -> vector<8x256xf32>
    %c16 = arith.constant 16 : index
    %c0_11 = arith.constant 0 : index
    %39 = vector.load %arg5[%c16, %c0_11] : memref<40x512xf32, #tpu.memory_space<vmem>>, vector<8x256xf32>
    tpu.vector_store %arg5[%c16, %c0_11], %38 {strides = array<i32>} : memref<40x512xf32, #tpu.memory_space<vmem>>, vector<8x256xf32>,
    %c240_i32_12 = arith.constant 240 : i32
    %40 = tpu.dynamic_rotate %27 by %c240_i32_12 dim 1 : vector<4x256xf32>, i32 -> vector<4x256xf32>
    %cst_13 = arith.constant 0.000000e+00 : f32
    %41 = vector.broadcast %cst_13 : f32 to vector<4x256xf32>
    %42 = arith.select %18, %40, %41 : vector<4x256xi1>, vector<4x256xf32>
    %43 = tpu.concatenate %42, %25 in 0 : vector<4x256xf32>, vector<4x256xf32> -> vector<8x256xf32>
    %c24 = arith.constant 24 : index
    %c0_14 = arith.constant 0 : index
    %44 = vector.load %arg5[%c24, %c0_14] : memref<40x512xf32, #tpu.memory_space<vmem>>, vector<8x256xf32>
    tpu.vector_store %arg5[%c24, %c0_14], %43 {strides = array<i32>} : memref<40x512xf32, #tpu.memory_space<vmem>>, vector<8x256xf32>,
    %c239_i32 = arith.constant 239 : i32
    %45 = tpu.dynamic_rotate %27 by %c239_i32 dim 1 : vector<4x256xf32>, i32 -> vector<4x256xf32>
    %cst_15 = arith.constant 0.000000e+00 : f32
    %46 = vector.broadcast %cst_15 : f32 to vector<4x256xf32>
    %47 = arith.select %24, %45, %46 : vector<4x256xi1>, vector<4x256xf32>
    %48 = tpu.concatenate %47, %25 in 0 : vector<4x256xf32>, vector<4x256xf32> -> vector<8x256xf32>
    %c32 = arith.constant 32 : index
    %c0_16 = arith.constant 0 : index
    %49 = vector.load %arg5[%c32, %c0_16] : memref<40x512xf32, #tpu.memory_space<vmem>>, vector<8x256xf32>
    tpu.vector_store %arg5[%c32, %c0_16], %48 {strides = array<i32>} : memref<40x512xf32, #tpu.memory_space<vmem>>, vector<8x256xf32>,
    %c1 = arith.constant 1 : index
    %c0_17 = arith.constant 0 : index
    %c0_18 = arith.constant 0 : index
    %50 = vector.load %arg1[%c1, %c0_17, %c0_18] : memref<2x4x256xf32, #tpu.memory_space<vmem>>, vector<1x4x256xf32>
    %51 = vector.shape_cast %50 : vector<1x4x256xf32> to vector<4x256xf32>
    %52 = tpu.concatenate %51, %25 in 0 : vector<4x256xf32>, vector<4x256xf32> -> vector<8x256xf32>
    %c0_19 = arith.constant 0 : index
    %c256 = arith.constant 256 : index
    %53 = vector.load %arg5[%c0_19, %c256] : memref<40x512xf32, #tpu.memory_space<vmem>>, vector<8x256xf32>
    tpu.vector_store %arg5[%c0_19, %c256], %52 {strides = array<i32>} : memref<40x512xf32, #tpu.memory_space<vmem>>, vector<8x256xf32>,
    %c255_i32_20 = arith.constant 255 : i32
    %54 = tpu.dynamic_rotate %51 by %c255_i32_20 dim 1 : vector<4x256xf32>, i32 -> vector<4x256xf32>
    %cst_21 = arith.constant 0.000000e+00 : f32
    %55 = vector.broadcast %cst_21 : f32 to vector<4x256xf32>
    %56 = arith.select %22, %54, %55 : vector<4x256xi1>, vector<4x256xf32>
    %57 = tpu.concatenate %56, %25 in 0 : vector<4x256xf32>, vector<4x256xf32> -> vector<8x256xf32>
    %c8_22 = arith.constant 8 : index
    %c256_23 = arith.constant 256 : index
    %58 = vector.load %arg5[%c8_22, %c256_23] : memref<40x512xf32, #tpu.memory_space<vmem>>, vector<8x256xf32>
    tpu.vector_store %arg5[%c8_22, %c256_23], %57 {strides = array<i32>} : memref<40x512xf32, #tpu.memory_space<vmem>>, vector<8x256xf32>,
    %c241_i32_24 = arith.constant 241 : i32
    %59 = tpu.dynamic_rotate %51 by %c241_i32_24 dim 1 : vector<4x256xf32>, i32 -> vector<4x256xf32>
    %cst_25 = arith.constant 0.000000e+00 : f32
    %60 = vector.broadcast %cst_25 : f32 to vector<4x256xf32>
    %61 = arith.select %23, %59, %60 : vector<4x256xi1>, vector<4x256xf32>
    %62 = tpu.concatenate %61, %25 in 0 : vector<4x256xf32>, vector<4x256xf32> -> vector<8x256xf32>
    %c16_26 = arith.constant 16 : index
    %c256_27 = arith.constant 256 : index
    %63 = vector.load %arg5[%c16_26, %c256_27] : memref<40x512xf32, #tpu.memory_space<vmem>>, vector<8x256xf32>
    tpu.vector_store %arg5[%c16_26, %c256_27], %62 {strides = array<i32>} : memref<40x512xf32, #tpu.memory_space<vmem>>, vector<8x256xf32>,
    %c240_i32_28 = arith.constant 240 : i32
    %64 = tpu.dynamic_rotate %51 by %c240_i32_28 dim 1 : vector<4x256xf32>, i32 -> vector<4x256xf32>
    %cst_29 = arith.constant 0.000000e+00 : f32
    %65 = vector.broadcast %cst_29 : f32 to vector<4x256xf32>
    %66 = arith.select %18, %64, %65 : vector<4x256xi1>, vector<4x256xf32>
    %67 = tpu.concatenate %66, %25 in 0 : vector<4x256xf32>, vector<4x256xf32> -> vector<8x256xf32>
    %c24_30 = arith.constant 24 : index
    %c256_31 = arith.constant 256 : index
    %68 = vector.load %arg5[%c24_30, %c256_31] : memref<40x512xf32, #tpu.memory_space<vmem>>, vector<8x256xf32>
    tpu.vector_store %arg5[%c24_30, %c256_31], %67 {strides = array<i32>} : memref<40x512xf32, #tpu.memory_space<vmem>>, vector<8x256xf32>,
    %c239_i32_32 = arith.constant 239 : i32
    %69 = tpu.dynamic_rotate %51 by %c239_i32_32 dim 1 : vector<4x256xf32>, i32 -> vector<4x256xf32>
    %cst_33 = arith.constant 0.000000e+00 : f32
    %70 = vector.broadcast %cst_33 : f32 to vector<4x256xf32>
    %71 = arith.select %24, %69, %70 : vector<4x256xi1>, vector<4x256xf32>
    %72 = tpu.concatenate %71, %25 in 0 : vector<4x256xf32>, vector<4x256xf32> -> vector<8x256xf32>
    %c32_34 = arith.constant 32 : index
    %c256_35 = arith.constant 256 : index
    %73 = vector.load %arg5[%c32_34, %c256_35] : memref<40x512xf32, #tpu.memory_space<vmem>>, vector<8x256xf32>
    tpu.vector_store %arg5[%c32_34, %c256_35], %72 {strides = array<i32>} : memref<40x512xf32, #tpu.memory_space<vmem>>, vector<8x256xf32>,
    %c0_36 = arith.constant 0 : index
    %c0_37 = arith.constant 0 : index
    %74 = vector.load %arg2[%c0_36, %c0_37] : memref<8x40xf32, #tpu.memory_space<vmem>>, vector<8x40xf32>
    %c0_38 = arith.constant 0 : index
    %c0_39 = arith.constant 0 : index
    %75 = vector.load %arg5[%c0_38, %c0_39] : memref<40x512xf32, #tpu.memory_space<vmem>>, vector<40x512xf32>
    %cst_40 = arith.constant dense<0.000000e+00> : vector<8x512xf32>
    %76 = tpu.matmul %74, %75, %cst_40 {dimension_numbers = #tpu.dot_dimension_numbers<[1], [0], [0], [1], [0, 0, 1, 1], [], []>} : vector<8x40xf32>, vector<40x512xf32>, vector<8x512xf32> -> vector<8x512xf32>
    %c0_41 = arith.constant 0 : index
    %c0_42 = arith.constant 0 : index
    %77 = vector.load %arg3[%c0_41, %c0_42] : memref<8x1xf32, #tpu.memory_space<vmem>>, vector<8x1xf32>
    %78 = vector.broadcast %77 : vector<8x1xf32> to vector<8x512xf32>
    %79 = arith.addf %76, %78 : vector<8x512xf32>
    %80 = vector.extract_strided_slice %79 {offsets = [0, 0], sizes = [8, 256], strides = [1, 1]} : vector<8x512xf32> to vector<8x256xf32>
    %c0_43 = arith.constant 0 : index
    %c0_44 = arith.constant 0 : index
    %c0_45 = arith.constant 0 : index
    %81 = vector.load %arg4[%c0_43, %c0_44, %c0_45] : memref<2x8x256xf32, #tpu.memory_space<vmem>>, vector<1x8x256xf32>
    %82 = vector.shape_cast %81 : vector<1x8x256xf32> to vector<8x256xf32>
    %83 = vector.shape_cast %80 : vector<8x256xf32> to vector<1x8x256xf32>
    tpu.vector_store %arg4[%c0_43, %c0_44, %c0_45], %83 {strides = array<i32>} : memref<2x8x256xf32, #tpu.memory_space<vmem>>, vector<1x8x256xf32>,
    %84 = vector.extract_strided_slice %79 {offsets = [0, 256], sizes = [8, 256], strides = [1, 1]} : vector<8x512xf32> to vector<8x256xf32>
    %c1_46 = arith.constant 1 : index
    %c0_47 = arith.constant 0 : index
    %c0_48 = arith.constant 0 : index
    %85 = vector.load %arg4[%c1_46, %c0_47, %c0_48] : memref<2x8x256xf32, #tpu.memory_space<vmem>>, vector<1x8x256xf32>
    %86 = vector.shape_cast %85 : vector<1x8x256xf32> to vector<8x256xf32>
    %87 = vector.shape_cast %84 : vector<8x256xf32> to vector<1x8x256xf32>
    tpu.vector_store %arg4[%c1_46, %c0_47, %c0_48], %87 {strides = array<i32>} : memref<2x8x256xf32, #tpu.memory_space<vmem>>, vector<1x8x256xf32>,
    return
  }
  func.func @transform_0(%arg0: i32) -> (i32, i32, i32) {
    %c0_i32 = arith.constant 0 : i32
    %c0_i32_0 = arith.constant 0 : i32
    %c0_i32_1 = arith.constant 0 : i32
    %c0_i32_2 = arith.constant 0 : i32
    return %c0_i32, %c0_i32_0, %c0_i32_1 : i32, i32, i32
  }
  func.func @transform_1(%arg0: i32) -> (i32, i32) {
    %c0_i32 = arith.constant 0 : i32
    %c0_i32_0 = arith.constant 0 : i32
    %c0_i32_1 = arith.constant 0 : i32
    return %c0_i32, %c0_i32_0 : i32, i32
  }
  func.func @transform_2(%arg0: i32) -> (i32, i32) {
    %c0_i32 = arith.constant 0 : i32
    %c0_i32_0 = arith.constant 0 : i32
    %c0_i32_1 = arith.constant 0 : i32
    return %c0_i32, %c0_i32_0 : i32, i32
  }
  func.func @transform_3(%arg0: i32) -> (i32, i32, i32) {
    %c0_i32 = arith.constant 0 : i32
    %c0_i32_0 = arith.constant 0 : i32
    %c0_i32_1 = arith.constant 0 : i32
    %c0_i32_2 = arith.constant 0 : i32
    return %c0_i32, %c0_i32_0, %c0_i32_1 : i32, i32, i32
  }
}

</mosaic_0001>

<llo_original>
// kernel: tpu_custom_call.1
$region0: #{tpu_custom_call.1}
  #allocation0 [shape = 'u32[]', space=smem, size = 0x4, offset = 0x4, fixed_abs, tag = 'smem constant byte address 0x4 - core index']
  #allocation1 [shape = 'u32[72,128]{1,0:T(1,128)}', space=vmem, size = 0x9000, scoped, tag = 'internal scratch']
  #allocation2 [shape = 'f32[40,512]{1,0:T(8,128)}', space=vmem, size = 0x14000, scoped, tag = 'scratch operand']
  %s0 = inlined_call_operand.hbm [shape: f32[2,4,256], index: 0, kind: input, shape index: {}]
  %s1 = inlined_call_operand.vmem [shape: f32[8,40], index: 1, kind: input, shape index: {}]
  %s2 = inlined_call_operand.vmem [shape: f32[8,1], index: 2, kind: input, shape index: {}]
  %s3 = inlined_call_operand.hbm [shape: f32[2,8,256], index: 3, kind: output, shape index: {}]
  %s4 = sld [smem:[#allocation0]]
  $region26: #{tpu_custom_call.1} parent=0
    _
  %s6 = ssub.s32 1, %s4
  %s7 = scalar_select 0, %s6, %s4
  $region1: #{tpu_custom_call.1} parent=0
    #allocation3 [shape = 'u8[8192]{0}', space=vmem, size = 0x2000, scoped, tag = 'input window, operand 0, single buffered']
    #allocation4 [shape = 's32[1]{0}', space=sflag, size = 0x4, scoped, tag = 'scoped memory for tpu_custom_call.1']
    #allocation5 [shape = 's32[1]{0}', space=sflag, size = 0x4, scoped, tag = 'scoped memory for tpu_custom_call.1']
    #allocation6 [shape = 'u8[16384]{0}', space=vmem, size = 0x4000, scoped, tag = 'output window, operand 0, single buffered']
    %8 = vsyncpa [#allocation4], 0
    %9 = vsyncpa [#allocation5], 0
    // Predicated region
    $region2: #{tpu_custom_call.1} parent=1 // pred_check
      _
    $region3: #{tpu_custom_call.1} parent=1 // pred_check_branch
      %11 = sbr.rel (0) target = $region5
    $region4: #{tpu_custom_call.1} parent=1 // pred_region
      %13 = vsyncadd [#allocation4], 0
      %s14 = sshll.u32 %s0, 4
      %s15 = int_to_ptr.hbm [resolvable:$true] %s14
      %s16 = sshll.u32 [#allocation3], 4
      %s17 = int_to_ptr.vmem [resolvable:$true] %s16
      %22 = dma.hbm_to_vmem [thread:$0]  %s15, 256, %s17, [#allocation4], 128, 128, 8
    $region5: #{tpu_custom_call.1} parent=1 // pred_fallthru
      _
    // Predicated region
    $region6: #{tpu_custom_call.1} parent=1 // pred_check
      _
    $region7: #{tpu_custom_call.1} parent=1 // pred_check_branch
      %24 = sbr.rel (0) target = $region9
    $region8: #{tpu_custom_call.1} parent=1 // pred_region
      _
    $region9: #{tpu_custom_call.1} parent=1 // pred_fallthru
      _
    // Predicated region
    $region10: #{tpu_custom_call.1} parent=1 // pred_check
      _
    $region11: #{tpu_custom_call.1} parent=1 // pred_check_branch
      %26 = sbr.rel (0) target = $region13
    $region12: #{tpu_custom_call.1} parent=1 // pred_region
      _
    $region13: #{tpu_custom_call.1} parent=1 // pred_fallthru
      _
    // Predicated region
    $region14: #{tpu_custom_call.1} parent=1 // pred_check
      _
    $region15: #{tpu_custom_call.1} parent=1 // pred_check_branch
      %28 = sbr.rel (0) target = $region17
    $region16: #{tpu_custom_call.1} parent=1 // pred_region
      %30 = dma.done [#allocation4], 256
    $region17: #{tpu_custom_call.1} parent=1 // pred_fallthru
      _
    %v31 = vlaneseq
    %v32 = vand.u32 %v31, 127
    %v33 = vadd.s32 %v32, 128
    %vm34 = vcmp.lt.s32.totalorder %v32, 0
    %v35 = vsub.s32 0, %v32
    %v36 = vsel %vm34, %v35, %v32
    %v37 = vshrl.u32 %v36, 4
    %v38 = vand.u32 %v36, 15
    %v39 = vsub.s32 0, %v38
    %v40 = vsel %vm34, %v39, %v38
    %vm41 = vcmp.lt.s32.totalorder %v33, 0
    %v42 = vsub.s32 0, %v33
    %v43 = vsel %vm41, %v42, %v33
    %v44 = vshrl.u32 %v43, 4
    %v45 = vand.u32 %v43, 15
    %v46 = vsub.s32 0, %v45
    %v47 = vsel %vm41, %v46, %v45
    %vm48 = vcmp.ne.s32.totalorder %v40, 0
    %vm49 = vcmp.ne.s32.totalorder %v47, 0
    %vm50 = vcmp.lt.s32.totalorder %v40, 0
    %vm51 = vcmp.lt.s32.totalorder %v47, 0
    %vm52 = vmand %vm50, %vm48
    %vm53 = vmand %vm51, %vm49
    %v54 = vadd.s32 %v40, 16
    %v55 = vadd.s32 %v47, 16
    %v56 = vsel %vm52, %v54, %v40
    %v57 = vsel %vm53, %v55, %v47
    %vm58 = vcmp.lt.s32.totalorder %v32, 240
    %vm59 = vcmp.lt.s32.totalorder %v33, 240
    %vm60 = vcmp.ge.s32.totalorder %v56, 1
    %vm61 = vcmp.ge.s32.totalorder %v57, 1
    %vm62 = vcmp.le.s32.totalorder %v56, 14
    %vm63 = vcmp.le.s32.totalorder %v57, 14
    %vm64 = vmand %vm58, %vm60
    %vm65 = vmand %vm59, %vm61
    %vm66 = vmand %vm58, %vm62
    %vm67 = vmand %vm59, %vm63
    %v68 = vld [vmem:[#allocation3] sm:$0xff]
    %70 = vst [vmem:[#allocation1] ss:$2 sm:$0xff] %v68
    %v71 = vld.sshfl [vmem:[#allocation1] sm:$0xff pattern:$0x75316420]
    %v72 = vld.sshfl [vmem:[#allocation1 + $0x8] sm:$0xff pattern:$0x75316420]
    %vm75 = vcmask 1043456
    %v76 = vsel %vm75, %v71, 0.0
    %v77 = vsel %vm75, %v72, 0.0
    %78 = vst [vmem:[#allocation2] sm:$0xff] %v76
    %79 = vst [vmem:[#allocation2 + $0x8] sm:$0xff] %v77
    %80 = vst [vmem:[#allocation1] ss:$2 sm:$0xff] %v68
    %v81 = vld.sshfl [vmem:[#allocation1] sm:$0xff pattern:$0x75316420]
    %v82 = vld.sshfl [vmem:[#allocation1 + $0x8] sm:$0xff pattern:$0x75316420]
    %85 = vrot.lane.b32.xlu0 %v81, 127
    %v86 = vpop.permute.xlu0 %85
    %87 = vrot.lane.b32.xlu0 %v82, 127
    %v88 = vpop.permute.xlu0 %87
    %vm89 = vcmp.lt.s32.totalorder %v32, 127
    %v90 = vsel %vm89, %v86, %v88
    %v91 = vsel %vm89, %v88, %v86
    %v92 = vsel %vm62, %v90, 0.0
    %v93 = vsel %vm63, %v91, 0.0
    %v94 = vsel %vm75, %v92, 0.0
    %v95 = vsel %vm75, %v93, 0.0
    %96 = vst [vmem:[#allocation2 + $0x20] sm:$0xff] %v94
    %97 = vst [vmem:[#allocation2 + $0x28] sm:$0xff] %v95
    %98 = vst [vmem:[#allocation1] ss:$2 sm:$0xff] %v68
    %v99 = vld.sshfl [vmem:[#allocation1] sm:$0xff pattern:$0x75316420]
    %v100 = vld.sshfl [vmem:[#allocation1 + $0x8] sm:$0xff pattern:$0x75316420]
    %103 = vrot.lane.b32.xlu0 %v99, 113
    %v104 = vpop.permute.xlu0 %103
    %105 = vrot.lane.b32.xlu0 %v100, 113
    %v106 = vpop.permute.xlu0 %105
    %vm107 = vcmp.lt.s32.totalorder %v32, 113
    %v108 = vsel %vm107, %v104, %v106
    %v109 = vsel %vm107, %v106, %v104
    %v110 = vsel %vm64, %v108, 0.0
    %v111 = vsel %vm65, %v109, 0.0
    %v112 = vsel %vm75, %v110, 0.0
    %v113 = vsel %vm75, %v111, 0.0
    %114 = vst [vmem:[#allocation2 + $0x40] sm:$0xff] %v112
    %115 = vst [vmem:[#allocation2 + $0x48] sm:$0xff] %v113
    %116 = vst [vmem:[#allocation1] ss:$2 sm:$0xff] %v68
    %v117 = vld.sshfl [vmem:[#allocation1] sm:$0xff pattern:$0x75316420]
    %v118 = vld.sshfl [vmem:[#allocation1 + $0x8] sm:$0xff pattern:$0x75316420]
    %121 = vrot.lane.b32.xlu0 %v117, 112
    %v122 = vpop.permute.xlu0 %121
    %123 = vrot.lane.b32.xlu0 %v118, 112
    %v124 = vpop.permute.xlu0 %123
    %vm125 = vcmp.lt.s32.totalorder %v32, 112
    %v126 = vsel %vm125, %v122, %v124
    %v127 = vsel %vm125, %v124, %v122
    %v128 = vsel %vm58, %v126, 0.0
    %v129 = vsel %vm59, %v127, 0.0
    %v130 = vsel %vm75, %v128, 0.0
    %v131 = vsel %vm75, %v129, 0.0
    %132 = vst [vmem:[#allocation2 + $0x60] sm:$0xff] %v130
    %133 = vst [vmem:[#allocation2 + $0x68] sm:$0xff] %v131
    %134 = vst [vmem:[#allocation1] ss:$2 sm:$0xff] %v68
    %v135 = vld.sshfl [vmem:[#allocation1] sm:$0xff pattern:$0x75316420]
    %v136 = vld.sshfl [vmem:[#allocation1 + $0x8] sm:$0xff pattern:$0x75316420]
    %139 = vrot.lane.b32.xlu0 %v135, 111
    %v140 = vpop.permute.xlu0 %139
    %141 = vrot.lane.b32.xlu0 %v136, 111
    %v142 = vpop.permute.xlu0 %141
    %vm143 = vcmp.lt.s32.totalorder %v32, 111
    %v144 = vsel %vm143, %v140, %v142
    %v145 = vsel %vm143, %v142, %v140
    %v146 = vsel %vm66, %v144, 0.0
    %v147 = vsel %vm67, %v145, 0.0
    %v148 = vsel %vm75, %v146, 0.0
    %v149 = vsel %vm75, %v147, 0.0
    %150 = vst [vmem:[#allocation2 + $0x80] sm:$0xff] %v148
    %151 = vst [vmem:[#allocation2 + $0x88] sm:$0xff] %v149
    %s152 = scalar_lea.vmem [#allocation3], 8
    %v153 = vld [vmem:[%s152] sm:$0xff]
    %155 = vst [vmem:[#allocation1] ss:$2 sm:$0xff] %v153
    %v156 = vld.sshfl [vmem:[#allocation1] sm:$0xff pattern:$0x75316420]
    %v157 = vld.sshfl [vmem:[#allocation1 + $0x8] sm:$0xff pattern:$0x75316420]
    %v160 = vsel %vm75, %v156, 0.0
    %v161 = vsel %vm75, %v157, 0.0
    %162 = vst [vmem:[#allocation2 + $0x10] sm:$0xff] %v160
    %163 = vst [vmem:[#allocation2 + $0x18] sm:$0xff] %v161
    %164 = vst [vmem:[#allocation1] ss:$2 sm:$0xff] %v153
    %v165 = vld.sshfl [vmem:[#allocation1] sm:$0xff pattern:$0x75316420]
    %v166 = vld.sshfl [vmem:[#allocation1 + $0x8] sm:$0xff pattern:$0x75316420]
    %169 = vrot.lane.b32.xlu0 %v165, 127
    %v170 = vpop.permute.xlu0 %169
    %171 = vrot.lane.b32.xlu0 %v166, 127
    %v172 = vpop.permute.xlu0 %171
    %v173 = vsel %vm89, %v170, %v172
    %v174 = vsel %vm89, %v172, %v170
    %v175 = vsel %vm62, %v173, 0.0
    %v176 = vsel %vm63, %v174, 0.0
    %v177 = vsel %vm75, %v175, 0.0
    %v178 = vsel %vm75, %v176, 0.0
    %179 = vst [vmem:[#allocation2 + $0x30] sm:$0xff] %v177
    %180 = vst [vmem:[#allocation2 + $0x38] sm:$0xff] %v178
    %181 = vst [vmem:[#allocation1] ss:$2 sm:$0xff] %v153
    %v182 = vld.sshfl [vmem:[#allocation1] sm:$0xff pattern:$0x75316420]
    %v183 = vld.sshfl [vmem:[#allocation1 + $0x8] sm:$0xff pattern:$0x75316420]
    %186 = vrot.lane.b32.xlu0 %v182, 113
    %v187 = vpop.permute.xlu0 %186
    %188 = vrot.lane.b32.xlu0 %v183, 113
    %v189 = vpop.permute.xlu0 %188
    %v190 = vsel %vm107, %v187, %v189
    %v191 = vsel %vm107, %v189, %v187
    %v192 = vsel %vm64, %v190, 0.0
    %v193 = vsel %vm65, %v191, 0.0
    %v194 = vsel %vm75, %v192, 0.0
    %v195 = vsel %vm75, %v193, 0.0
    %196 = vst [vmem:[#allocation2 + $0x50] sm:$0xff] %v194
    %197 = vst [vmem:[#allocation2 + $0x58] sm:$0xff] %v195
    %198 = vst [vmem:[#allocation1] ss:$2 sm:$0xff] %v153
    %v199 = vld.sshfl [vmem:[#allocation1] sm:$0xff pattern:$0x75316420]
    %v200 = vld.sshfl [vmem:[#allocation1 + $0x8] sm:$0xff pattern:$0x75316420]
    %203 = vrot.lane.b32.xlu0 %v199, 112
    %v204 = vpop.permute.xlu0 %203
    %205 = vrot.lane.b32.xlu0 %v200, 112
    %v206 = vpop.permute.xlu0 %205
    %v207 = vsel %vm125, %v204, %v206
    %v208 = vsel %vm125, %v206, %v204
    %v209 = vsel %vm58, %v207, 0.0
    %v210 = vsel %vm59, %v208, 0.0
    %v211 = vsel %vm75, %v209, 0.0
    %v212 = vsel %vm75, %v210, 0.0
    %213 = vst [vmem:[#allocation2 + $0x70] sm:$0xff] %v211
    %214 = vst [vmem:[#allocation2 + $0x78] sm:$0xff] %v212
    %215 = vst [vmem:[#allocation1] ss:$2 sm:$0xff] %v153
    %v216 = vld.sshfl [vmem:[#allocation1] sm:$0xff pattern:$0x75316420]
    %v217 = vld.sshfl [vmem:[#allocation1 + $0x8] sm:$0xff pattern:$0x75316420]
    %220 = vrot.lane.b32.xlu0 %v216, 111
    %v221 = vpop.permute.xlu0 %220
    %222 = vrot.lane.b32.xlu0 %v217, 111
    %v223 = vpop.permute.xlu0 %222
    %v224 = vsel %vm143, %v221, %v223
    %v225 = vsel %vm143, %v223, %v221
    %v226 = vsel %vm66, %v224, 0.0
    %v227 = vsel %vm67, %v225, 0.0
    %v228 = vsel %vm75, %v226, 0.0
    %v229 = vsel %vm75, %v227, 0.0
    %230 = vst [vmem:[#allocation2 + $0x90] sm:$0xff] %v228
    %231 = vst [vmem:[#allocation2 + $0x98] sm:$0xff] %v229
    %v232 = vld [vmem:[%s1] sm:$0xff]
    %v233 = vld [vmem:[#allocation2] sm:$0xff]
    %v234 = vld [vmem:[#allocation2 + $0x8] sm:$0xff]
    %v235 = vld [vmem:[#allocation2 + $0x10] sm:$0xff]
    %v236 = vld [vmem:[#allocation2 + $0x18] sm:$0xff]
    %v237 = vld [vmem:[#allocation2 + $0x20] sm:$0xff]
    %v238 = vld [vmem:[#allocation2 + $0x28] sm:$0xff]
    %v239 = vld [vmem:[#allocation2 + $0x30] sm:$0xff]
    %v240 = vld [vmem:[#allocation2 + $0x38] sm:$0xff]
    %v241 = vld [vmem:[#allocation2 + $0x40] sm:$0xff]
    %v242 = vld [vmem:[#allocation2 + $0x48] sm:$0xff]
    %v243 = vld [vmem:[#allocation2 + $0x50] sm:$0xff]
    %v244 = vld [vmem:[#allocation2 + $0x58] sm:$0xff]
    %v245 = vld [vmem:[#allocation2 + $0x60] sm:$0xff]
    %v246 = vld [vmem:[#allocation2 + $0x68] sm:$0xff]
    %v247 = vld [vmem:[#allocation2 + $0x70] sm:$0xff]
    %v248 = vld [vmem:[#allocation2 + $0x78] sm:$0xff]
    %v249 = vld [vmem:[#allocation2 + $0x80] sm:$0xff]
    %v250 = vld [vmem:[#allocation2 + $0x88] sm:$0xff]
    %v251 = vld [vmem:[#allocation2 + $0x90] sm:$0xff]
    %v252 = vld [vmem:[#allocation2 + $0x98] sm:$0xff]
    %v253 = vld [vmem:[%s2] sm:$0xff]
    %255 = vset.pattern.permute.xlu0 0
    %256 = vperm.xlu0 %255, %v253
    %v257 = vpop.permute.xlu0 %256
    %vm259 = vcmask 326656
    %v261 = vsel %vm259, %v232, 0
    %263 = vmatpush.msra.mxu0 0.0
    %264 = vmatpush.msra.mxu0 0.0
    %265 = vmatpush.msra.mxu0 0.0
    %266 = vmatpush.msra.mxu0 0.0
    %267 = vmatpush.msra.mxu0 0.0
    %268 = vmatpush.msra.mxu0 0.0
    %269 = vmatpush.msra.mxu0 0.0
    %270 = vmatpush.msra.mxu0 0.0
    %271 = vmatpush.msra.mxu0 0.0
    %272 = vmatpush.msra.mxu0 0.0
    %273 = vmatpush.msra.mxu0 0.0
    %274 = vmatpush.msra.mxu0 %v249
    %275 = vmatpush.msra.mxu0 %v245
    %276 = vmatpush.msra.mxu0 %v241
    %277 = vmatpush.msra.mxu0 %v237
    %278 = vmatpush.msra.mxu0 %v233
    %279 = vmatmul.f32.gmra.mxu0 %v261
    %v280 = vpop.f32.mrf.mxu0
    %v281 = vadd.f32 %v257, %v280
    %282 = vdwg.mxu0
    %283 = vmatpush.msra.mxu0 0.0
    %284 = vmatpush.msra.mxu0 0.0
    %285 = vmatpush.msra.mxu0 0.0
    %286 = vmatpush.msra.mxu0 0.0
    %287 = vmatpush.msra.mxu0 0.0
    %288 = vmatpush.msra.mxu0 0.0
    %289 = vmatpush.msra.mxu0 0.0
    %290 = vmatpush.msra.mxu0 0.0
    %291 = vmatpush.msra.mxu0 0.0
    %292 = vmatpush.msra.mxu0 0.0
    %293 = vmatpush.msra.mxu0 0.0
    %294 = vmatpush.msra.mxu0 %v250
    %295 = vmatpush.msra.mxu0 %v246
    %296 = vmatpush.msra.mxu0 %v242
    %297 = vmatpush.msra.mxu0 %v238
    %298 = vmatpush.msra.mxu0 %v234
    %299 = vmatmul.f32.gmra.mxu0 %v261
    %v300 = vpop.f32.mrf.mxu0
    %v301 = vadd.f32 %v257, %v300
    %302 = vdwg.mxu0
    %303 = vmatpush.msra.mxu0 0.0
    %304 = vmatpush.msra.mxu0 0.0
    %305 = vmatpush.msra.mxu0 0.0
    %306 = vmatpush.msra.mxu0 0.0
    %307 = vmatpush.msra.mxu0 0.0
    %308 = vmatpush.msra.mxu0 0.0
    %309 = vmatpush.msra.mxu0 0.0
    %310 = vmatpush.msra.mxu0 0.0
    %311 = vmatpush.msra.mxu0 0.0
    %312 = vmatpush.msra.mxu0 0.0
    %313 = vmatpush.msra.mxu0 0.0
    %314 = vmatpush.msra.mxu0 %v251
    %315 = vmatpush.msra.mxu0 %v247
    %316 = vmatpush.msra.mxu0 %v243
    %317 = vmatpush.msra.mxu0 %v239
    %318 = vmatpush.msra.mxu0 %v235
    %319 = vmatmul.f32.gmra.mxu0 %v261
    %v320 = vpop.f32.mrf.mxu0
    %v321 = vadd.f32 %v257, %v320
    %322 = vdwg.mxu0
    %323 = vmatpush.msra.mxu0 0.0
    %324 = vmatpush.msra.mxu0 0.0
    %325 = vmatpush.msra.mxu0 0.0
    %326 = vmatpush.msra.mxu0 0.0
    %327 = vmatpush.msra.mxu0 0.0
    %328 = vmatpush.msra.mxu0 0.0
    %329 = vmatpush.msra.mxu0 0.0
    %330 = vmatpush.msra.mxu0 0.0
    %331 = vmatpush.msra.mxu0 0.0
    %332 = vmatpush.msra.mxu0 0.0
    %333 = vmatpush.msra.mxu0 0.0
    %334 = vmatpush.msra.mxu0 %v252
    %335 = vmatpush.msra.mxu0 %v248
    %336 = vmatpush.msra.mxu0 %v244
    %337 = vmatpush.msra.mxu0 %v240
    %338 = vmatpush.msra.mxu0 %v236
    %339 = vmatmul.f32.gmra.mxu0 %v261
    %v340 = vpop.f32.mrf.mxu0
    %v341 = vadd.f32 %v257, %v340
    %342 = vdwg.mxu0
    %343 = vst [vmem:[#allocation6] sm:$0xff] %v281
    %344 = vst [vmem:[#allocation6 + $0x8] sm:$0xff] %v301
    %s345 = scalar_lea.vmem [#allocation6], 16
    %346 = vst [vmem:[%s345] sm:$0xff] %v321
    %347 = vst [vmem:[%s345 + $0x8] sm:$0xff] %v341
    // Predicated region
    $region18: #{tpu_custom_call.1} parent=1 // pred_check
      _
    $region19: #{tpu_custom_call.1} parent=1 // pred_check_branch
      %349 = sbr.rel (0) target = $region21
    $region20: #{tpu_custom_call.1} parent=1 // pred_region
      %351 = vsyncadd [#allocation5], 0
      %s352 = sshll.u32 [#allocation6], 4
      %s353 = int_to_ptr.vmem [resolvable:$true] %s352
      %s354 = sshll.u32 %s3, 4
      %s355 = int_to_ptr.hbm [resolvable:$true] %s354
      %360 = dma.vmem_to_hbm [thread:$0]  %s353, 512, %s355, [#allocation5], 256, 256, 16
    $region21: #{tpu_custom_call.1} parent=1 // pred_fallthru
      _
    // Predicated region
    $region22: #{tpu_custom_call.1} parent=1 // pred_check
      _
    $region23: #{tpu_custom_call.1} parent=1 // pred_check_branch
      %362 = sbr.rel (0) target = $region25
    $region24: #{tpu_custom_call.1} parent=1 // pred_region
      %364 = dma.done [#allocation5], 512
    $region25: #{tpu_custom_call.1} parent=1 // pred_fallthru
      _
    %365 = vsyncpa [#allocation4], 1
    %366 = vsyncpa [#allocation5], 1

</llo_original>
